<compile_context>
chip_gen: v6e
topology: v6e:2x2x1
jax: 0.10.0
libtpu: 0.0.40
codegen_flags: <defaults>
</compile_context>

<pallas_src>
import functools

import numpy as np
import jax
import jax.numpy as jnp
from jax import lax
from jax.experimental import pallas as pl
from jax.experimental.pallas import tpu as pltpu


def _round_up(v, m):
    return (v + m - 1) // m * m


def _causal_conv_kernel(x_ref, w_ref, o_ref, *scratch, kernel_size, dilation,
                        pad, tile_t, carry_halo):
    """One (batch, c_out-tile, time-tile) grid step.

    x_ref: (1, C_in_r, tile_t)    current time tile (time on lanes)
    w_ref: (K, CO_tile, C_in_r)   per-tap weight matrices
    o_ref: (1, CO_tile, tile_t)
    scratch[0] (iff pad > 0): (C_in_r, pad) halo = last `pad` time columns of
        the previous tile of this batch row (causal history).
    """
    if pad > 0:
        halo_ref = scratch[0]

        # History before t=0 is zero.  Resets at the first time tile of every
        # (batch, c_out-tile) sweep; time is the innermost sequential axis.
        @pl.when(pl.program_id(2) == 0)
        def _():
            halo_ref[...] = jnp.zeros_like(halo_ref)

        # (C_in_r, pad + tile_t): causal history stitched in front of the tile.
        x_full = jnp.concatenate([halo_ref[...], x_ref[0]], axis=-1)
    else:
        x_full = x_ref[0]

    # K accumulating dots, one per dilated tap.  Tap k for output column j
    # reads x_full[:, j + k*d]  (x_full column m is global time  t0 + m - pad).
    acc = None
    for k in range(kernel_size):
        if pad > 0:
            xs = x_full[:, k * dilation:k * dilation + tile_t]
        else:
            xs = x_full
        contrib = jnp.dot(w_ref[k], xs, preferred_element_type=jnp.float32)
        acc = contrib if acc is None else acc + contrib
    o_ref[0] = acc.astype(o_ref.dtype)

    if pad > 0 and carry_halo:
        # Carry the causal history for the next time tile of this batch row.
        halo_ref[...] = x_ref[0, :, tile_t - pad:]


def causal_conv1d(x, weight, *, dilation=1, time_tile=None, cout_tile=None,
                  compute_dtype=None):
    """x: (N, C_in, T), weight: (C_out, C_in, K) -> (N, C_out, T)."""
    n, c_in, t = x.shape
    c_out, c_in_w, k = weight.shape
    assert c_in_w == c_in, "groups != 1 not supported"  # TODO(synk): grouped conv
    pad = (k - 1) * dilation

    cdt = np.dtype(x.dtype) if compute_dtype is None else np.dtype(compute_dtype)
    itemsize = cdt.itemsize
    sub = max(8, 32 // itemsize)          # sublane granule: 8 f32, 16 bf16

    c_in_r = _round_up(c_in, sub)
    c_out_r = _round_up(c_out, sub)

    # C_out tiling: only when C_out is large (bounds weight/output VMEM on
    # v7x's 64 MiB budget and feeds the second TensorCore at small batch).
    if cout_tile is not None:
        co_tile = _round_up(cout_tile, sub)
        c_out_r = _round_up(c_out_r, co_tile)
    elif c_out_r > 512:
        co_tile = 256
        c_out_r = _round_up(c_out_r, co_tile)
    else:
        co_tile = c_out_r
    co_tiles = c_out_r // co_tile

    # Time tile (lane axis): largest 128-multiple keeping the double-buffered
    # x/y blocks plus temporaries a few MiB -- comfortably inside the scoped
    # VMEM limit on all generations, bigger tiles when channels are small.
    if time_tile is None:
        budget = 4 * 1024 * 1024
        time_tile = budget // max(1, (c_in_r + co_tile) * itemsize)
        time_tile = max(128, min(2048, (time_tile // 128) * 128))
    else:
        time_tile = max(128, _round_up(time_tile, 128))

    if t <= time_tile:
        tt, t_tiles, t_padded = t, 1, t              # single tile, no time pad
    else:
        tt = max(time_tile, _round_up(pad, 128))     # halo must fit in 1 tile
        t_tiles = -(-t // tt)
        t_padded = t_tiles * tt

    # Pad channels to the sublane granule and time to a tile multiple.
    # x stays NCW (channels on sublanes, time on lanes): no transposes.
    x_p = jnp.pad(x, ((0, 0), (0, c_in_r - c_in), (0, t_padded - t))).astype(cdt)

    # Weights: (C_out, C_in, K) -> (K, C_out_r, C_in_r)  (one matrix per tap).
    w_p = jnp.transpose(weight, (2, 0, 1))
    w_p = jnp.pad(w_p, ((0, 0), (0, c_out_r - c_out), (0, c_in_r - c_in)))
    w_p = w_p.astype(cdt)

    kernel = functools.partial(
        _causal_conv_kernel, kernel_size=k, dilation=dilation, pad=pad,
        tile_t=tt, carry_halo=(t_tiles > 1))
    scratch = [pltpu.VMEM((c_in_r, pad), cdt)] if pad > 0 else []

    y = pl.pallas_call(
        kernel,
        out_shape=jax.ShapeDtypeStruct((n, c_out_r, t_padded), x.dtype),
        grid_spec=pltpu.PrefetchScalarGridSpec(
            num_scalar_prefetch=0,
            grid=(n, co_tiles, t_tiles),
            in_specs=[
                pl.BlockSpec((1, c_in_r, tt), lambda b, co, i: (b, 0, i)),
                pl.BlockSpec((k, co_tile, c_in_r), lambda b, co, i: (0, co, 0)),
            ],
            out_specs=pl.BlockSpec((1, co_tile, tt), lambda b, co, i: (b, co, i)),
            scratch_shapes=scratch,
        ),
        compiler_params=pltpu.CompilerParams(
            # batch / C_out tiles shard across TensorCores; time must remain
            # the last, sequential ("arbitrary") axis for the halo carry.
            dimension_semantics=("parallel", "parallel", "arbitrary"),
            vmem_limit_bytes=64 * 1024 * 1024),
    )(x_p, w_p)

    # Crop channel / time padding (no transpose needed).
    return y[:, :c_out, :t]


def _reference(x, weight, dilation):
    """Pure-JAX reference mirroring the PyTorch module (pad both sides, crop tail)."""
    k = weight.shape[-1]
    pad = (k - 1) * dilation
    y = lax.conv_general_dilated(
        x, weight,
        window_strides=(1,),
        padding=[(pad, pad)],
        rhs_dilation=(dilation,),
        dimension_numbers=("NCH", "OIH", "NCH"),
    )
    return y[..., :-pad] if pad > 0 else y


if __name__ == "__main__":
    key = jax.random.PRNGKey(0)
    kx, kw, kx2, kx3 = jax.random.split(key, 4)

    # --- Small shapes consistent with the module: batch=2, in=4, out=8, T=16.
    N, C_IN, C_OUT, T = 2, 4, 8, 16
    KSZ, DIL = 3, 2
    x = jax.random.normal(kx, (N, C_IN, T), dtype=jnp.float32)
    bound = 1.0 / (C_IN * KSZ) ** 0.5
    w = jax.random.uniform(kw, (C_OUT, C_IN, KSZ), dtype=jnp.float32,
                           minval=-bound, maxval=bound)

    y = jax.block_until_ready(causal_conv1d(x, w, dilation=DIL))
    y_ref = _reference(x, w, DIL)
    assert y.shape == (N, C_OUT, T), y.shape
    assert jnp.allclose(y, y_ref, atol=1e-5, rtol=1e-5), "mismatch (small)"

    # --- Multi-tile path: halo carried across 128-wide time tiles.
    T2 = 384
    x2 = jax.random.normal(kx2, (N, C_IN, T2), dtype=jnp.float32)
    y2 = jax.block_until_ready(causal_conv1d(x2, w, dilation=DIL, time_tile=128))
    assert jnp.allclose(y2, _reference(x2, w, DIL),
                        atol=1e-5, rtol=1e-5), "mismatch (tiled)"

    # --- Large-channel / C_out-tiled / bf16-compute path.
    CI3, CO3, K3, D3, T3 = 192, 576, 3, 4, 256
    x3 = jax.random.normal(kx3, (1, CI3, T3), dtype=jnp.float32)
    b3 = 1.0 / (CI3 * K3) ** 0.5
    w3 = jax.random.uniform(jax.random.PRNGKey(1), (CO3, CI3, K3),
                            dtype=jnp.float32, minval=-b3, maxval=b3)
    y3 = jax.block_until_ready(
        causal_conv1d(x3, w3, dilation=D3, time_tile=128,
                      compute_dtype=jnp.bfloat16))
    y3_ref = _reference(x3.astype(jnp.bfloat16).astype(jnp.float32),
                        w3.astype(jnp.bfloat16).astype(jnp.float32), D3)
    assert y3.shape == (1, CO3, T3), y3.shape
    assert jnp.allclose(y3, y3_ref, atol=2e-2, rtol=2e-2), "mismatch (bf16/large)"

    print("KERNEL_OK")
</pallas_src>

<mosaic_0001>
module attributes {stable_mosaic.version = 11 : i64} {
  func.func @_causal_conv_kernel(%arg0: i32, %arg1: i32, %arg2: i32, %arg3: memref<1x8x16xf32, #tpu.memory_space<vmem>>, %arg4: memref<3x8x8xf32, #tpu.memory_space<vmem>>, %arg5: memref<1x8x16xf32, #tpu.memory_space<vmem>>, %arg6: memref<8x4xf32, #tpu.memory_space<vmem>>) attributes {dimension_semantics = [#tpu.dimension_semantics<parallel>, #tpu.dimension_semantics<parallel>, #tpu.dimension_semantics<arbitrary>], iteration_bounds = array<i64: 2, 1, 1>, scalar_prefetch = 0 : i64, scratch_operands = 1 : i64, tpu.core_type = #tpu.core_type<tc>, window_params = [{transform_indices = @transform_0, window_bounds = array<i64: 1, 8, 16>}, {transform_indices = @transform_1, window_bounds = array<i64: 3, 8, 8>}, {transform_indices = @transform_2, window_bounds = array<i64: 1, 8, 16>}]} {
    %c0_i32 = arith.constant 0 : i32
    %0 = arith.cmpi eq, %arg2, %c0_i32 : i32
    %1 = arith.extui %0 : i1 to i32
    %c0_i32_0 = arith.constant 0 : i32
    %2 = arith.cmpi ne, %1, %c0_i32_0 : i32
    scf.if %2 {
      %cst_17 = arith.constant 0.000000e+00 : f32
      %24 = vector.broadcast %cst_17 : f32 to vector<8x4xf32>
      %c0_18 = arith.constant 0 : index
      %c0_19 = arith.constant 0 : index
      %25 = vector.load %arg6[%c0_18, %c0_19] : memref<8x4xf32, #tpu.memory_space<vmem>>, vector<8x4xf32>
      tpu.vector_store %arg6[%c0_18, %c0_19], %24 {strides = array<i32>} : memref<8x4xf32, #tpu.memory_space<vmem>>, vector<8x4xf32>,
    } else {
    }
    %c0 = arith.constant 0 : index
    %c0_1 = arith.constant 0 : index
    %3 = vector.load %arg6[%c0, %c0_1] : memref<8x4xf32, #tpu.memory_space<vmem>>, vector<8x4xf32>
    %c0_2 = arith.constant 0 : index
    %c0_3 = arith.constant 0 : index
    %c0_4 = arith.constant 0 : index
    %4 = vector.load %arg3[%c0_2, %c0_3, %c0_4] : memref<1x8x16xf32, #tpu.memory_space<vmem>>, vector<1x8x16xf32>
    %5 = vector.shape_cast %4 : vector<1x8x16xf32> to vector<8x16xf32>
    %6 = tpu.concatenate %3, %5 in 1 : vector<8x4xf32>, vector<8x16xf32> -> vector<8x20xf32>
    %7 = vector.extract_strided_slice %6 {offsets = [0, 0], sizes = [8, 16], strides = [1, 1]} : vector<8x20xf32> to vector<8x16xf32>
    %c0_5 = arith.constant 0 : index
    %c0_6 = arith.constant 0 : index
    %c0_7 = arith.constant 0 : index
    %8 = vector.load %arg4[%c0_5, %c0_6, %c0_7] : memref<3x8x8xf32, #tpu.memory_space<vmem>>, vector<1x8x8xf32>
    %9 = vector.shape_cast %8 : vector<1x8x8xf32> to vector<8x8xf32>
    %cst = arith.constant dense<0.000000e+00> : vector<8x16xf32>
    %10 = tpu.matmul %9, %7, %cst {dimension_numbers = #tpu.dot_dimension_numbers<[1], [0], [0], [1], [0, 0, 1, 1], [], []>} : vector<8x8xf32>, vector<8x16xf32>, vector<8x16xf32> -> vector<8x16xf32>
    %11 = vector.extract_strided_slice %6 {offsets = [0, 2], sizes = [8, 16], strides = [1, 1]} : vector<8x20xf32> to vector<8x16xf32>
    %c1 = arith.constant 1 : index
    %c0_8 = arith.constant 0 : index
    %c0_9 = arith.constant 0 : index
    %12 = vector.load %arg4[%c1, %c0_8, %c0_9] : memref<3x8x8xf32, #tpu.memory_space<vmem>>, vector<1x8x8xf32>
    %13 = vector.shape_cast %12 : vector<1x8x8xf32> to vector<8x8xf32>
    %cst_10 = arith.constant dense<0.000000e+00> : vector<8x16xf32>
    %14 = tpu.matmul %13, %11, %cst_10 {dimension_numbers = #tpu.dot_dimension_numbers<[1], [0], [0], [1], [0, 0, 1, 1], [], []>} : vector<8x8xf32>, vector<8x16xf32>, vector<8x16xf32> -> vector<8x16xf32>
    %15 = arith.addf %10, %14 : vector<8x16xf32>
    %16 = vector.extract_strided_slice %6 {offsets = [0, 4], sizes = [8, 16], strides = [1, 1]} : vector<8x20xf32> to vector<8x16xf32>
    %c2 = arith.constant 2 : index
    %c0_11 = arith.constant 0 : index
    %c0_12 = arith.constant 0 : index
    %17 = vector.load %arg4[%c2, %c0_11, %c0_12] : memref<3x8x8xf32, #tpu.memory_space<vmem>>, vector<1x8x8xf32>
    %18 = vector.shape_cast %17 : vector<1x8x8xf32> to vector<8x8xf32>
    %cst_13 = arith.constant dense<0.000000e+00> : vector<8x16xf32>
    %19 = tpu.matmul %18, %16, %cst_13 {dimension_numbers = #tpu.dot_dimension_numbers<[1], [0], [0], [1], [0, 0, 1, 1], [], []>} : vector<8x8xf32>, vector<8x16xf32>, vector<8x16xf32> -> vector<8x16xf32>
    %20 = arith.addf %15, %19 : vector<8x16xf32>
    %c0_14 = arith.constant 0 : index
    %c0_15 = arith.constant 0 : index
    %c0_16 = arith.constant 0 : index
    %21 = vector.load %arg5[%c0_14, %c0_15, %c0_16] : memref<1x8x16xf32, #tpu.memory_space<vmem>>, vector<1x8x16xf32>
    %22 = vector.shape_cast %21 : vector<1x8x16xf32> to vector<8x16xf32>
    %23 = vector.shape_cast %20 : vector<8x16xf32> to vector<1x8x16xf32>
    tpu.vector_store %arg5[%c0_14, %c0_15, %c0_16], %23 {strides = array<i32>} : memref<1x8x16xf32, #tpu.memory_space<vmem>>, vector<1x8x16xf32>,
    return
  }
  func.func @transform_0(%arg0: i32, %arg1: i32, %arg2: i32) -> (i32, i32, i32) {
    %c0_i32 = arith.constant 0 : i32
    %c0_i32_0 = arith.constant 0 : i32
    return %arg0, %c0_i32, %arg2 : i32, i32, i32
  }
  func.func @transform_1(%arg0: i32, %arg1: i32, %arg2: i32) -> (i32, i32, i32) {
    %c0_i32 = arith.constant 0 : i32
    %c0_i32_0 = arith.constant 0 : i32
    %c0_i32_1 = arith.constant 0 : i32
    return %c0_i32, %arg1, %c0_i32_0 : i32, i32, i32
  }
  func.func @transform_2(%arg0: i32, %arg1: i32, %arg2: i32) -> (i32, i32, i32) {
    %c0_i32 = arith.constant 0 : i32
    return %arg0, %arg1, %arg2 : i32, i32, i32
  }
}

</mosaic_0001>

<llo_original>
// kernel: tpu_custom_call.1
$region0: #{tpu_custom_call.1}
  #allocation0 [shape = 'u32[]', space=smem, size = 0x4, offset = 0x4, fixed_abs, tag = 'smem constant byte address 0x4 - core index']
  #allocation1 [shape = 'u32[144,128]{1,0:T(1,128)}', space=vmem, size = 0x12000, scoped, tag = 'internal scratch']
  #allocation2 [shape = 'f32[8,4]{1,0:T(8,128)}', space=vmem, size = 0x1000, scoped, tag = 'scratch operand']
  %s0 = inlined_call_operand.hbm [shape: f32[2,8,16], index: 0, kind: input, shape index: {}]
  %s1 = inlined_call_operand.hbm [shape: f32[3,8,8], index: 1, kind: input, shape index: {}]
  %s2 = inlined_call_operand.hbm [shape: f32[2,8,16], index: 2, kind: output, shape index: {}]
  %s3 = sld [smem:[#allocation0]]
  $region53: #{tpu_custom_call.1} parent=0
    _
  %s5 = ssub.s32 1, %s3
  %s6 = scalar_select 0, %s5, %s3
  $region1: #{tpu_custom_call.1} parent=0
    #allocation3 [shape = 'u8[8192]{0}', space=vmem, size = 0x2000, scoped, tag = 'input window, operand 0']
    #allocation4 [shape = 's32[2]{0}', space=sflag, size = 0x8, scoped, tag = 'scoped memory for tpu_custom_call.1']
    #allocation5 [shape = 's32[2]{0}', space=sflag, size = 0x8, scoped, tag = 'scoped memory for tpu_custom_call.1']
    #allocation6 [shape = 'u8[12288]{0}', space=vmem, size = 0x3000, scoped, tag = 'input window, operand 1, single buffered']
    #allocation7 [shape = 's32[1]{0}', space=sflag, size = 0x4, scoped, tag = 'scoped memory for tpu_custom_call.1']
    #allocation8 [shape = 'u8[8192]{0}', space=vmem, size = 0x2000, scoped, tag = 'output window, operand 0']
    %7 = vsyncpa [#allocation4], 0
    %s8 = scalar_lea.sflag [#allocation4], 1
    %9 = vsyncpa %s8, 0
    %10 = vsyncpa [#allocation7], 0
    %11 = vsyncpa [#allocation5], 0
    %s12 = scalar_lea.sflag [#allocation5], 1
    %13 = vsyncpa %s12, 0
    loop: start=0, step=1, limit=4
    $region2: #{tpu_custom_call.1} parent=1 // loop_pre_header
      _
    $region3: #{tpu_custom_call.1} parent=1 // loop_header
      %s15 = sphi 0, %s19
      %p16 = scmp.ge.s32.totalorder %s15, 4
      %s22 = sphi 0, %s41
      %s23 = sphi 0, %s37
      %s24 = sphi 0, %s33
      %s25 = sphi 0, %s22
      %s26 = sphi 0, %s23
      %s27 = sphi 0, %s24
      %s28 = sphi 0, %s25
      %s29 = sphi 0, %s26
      %s30 = sphi 0, %s27
      %s46 = sphi 0, %s48
      %s49 = sphi 0, %s46
      %s50 = sphi 0, %s49
      %s66 = sphi 0, %s50
      %s72 = sphi 0, %s74
      %s75 = sphi 0, %s72
      %s76 = sphi 0, %s75
      %s92 = sphi 0, %s76
      %s102 = sphi 0, %s104
      %s105 = sphi 0, %s102
      %s106 = sphi 0, %s105
      %s122 = sphi 0, %s106
    $region4: #{tpu_custom_call.1} parent=1 // loop_header_branch
      %18 = sbr.rel (%p16) target = $region8
    $region5: #{tpu_custom_call.1} parent=1 // loop_body
      %s20 = ssub.s32 %s15, 1
      %s21 = ssub.s32 %s15, 2
      %s31 = sadd.s32 1, %s24
      %p32 = scmp.ge.s32.totalorder %s31, 1
      %s33 = scalar_select %p32, 0, %s31
      %s34 = sadd.s32 1, %s23
      %s35 = scalar_select %p32, %s34, %s23
      %p36 = scmp.ge.s32.totalorder %s35, 1
      %s37 = scalar_select %p36, 0, %s35
      %s38 = sadd.s32 1, %s22
      %s39 = scalar_select %p36, %s38, %s22
      %p40 = scmp.ge.s32.totalorder %s39, 2
      %s41 = scalar_select %p40, 0, %s39
      %s42 = ssub.s32 %s22, %s41
      %s43 = ssub.s32 %s24, %s33
      %s44 = sor.u32 %s42, %s43
      %p45 = scmp.eq.s32.totalorder %s44, 0
      %s47 = sadd.s32 %s46, 1
      %s48 = scalar_select %p45, %s46, %s47
      %p51 = pneg %p45
      %p52 = scmp.eq.s32.totalorder %s15, 1
      %p53 = por %p51, %p52
      %p54 = scmp.ne.s32.totalorder %s46, %s49
      %p55 = scmp.eq.s32.totalorder %s15, 0
      %p56 = por %p54, %p55
      %p57 = scmp.ne.s32.totalorder %s46, %s49
      %p58 = scmp.eq.s32.totalorder %s20, 1
      %p59 = por %p57, %p58
      %p60 = scmp.ne.s32.totalorder %s49, %s50
      %p61 = scmp.eq.s32.totalorder %s20, 0
      %p62 = por %p60, %p61
      %p63 = scmp.ne.s32.totalorder %s49, %s50
      %p64 = scmp.eq.s32.totalorder %s21, 1
      %p65 = por %p63, %p64
      %p67 = scmp.ne.s32.totalorder %s50, %s66
      %p68 = scmp.eq.s32.totalorder %s21, 0
      %p69 = por %p67, %p68
      %s70 = ssub.s32 %s23, %s37
      %p71 = scmp.eq.s32.totalorder %s70, 0
      %s73 = sadd.s32 %s72, 1
      %s74 = scalar_select %p71, %s72, %s73
      %p77 = pneg %p71
      %p78 = scmp.eq.s32.totalorder %s15, 1
      %p79 = por %p77, %p78
      %p80 = scmp.ne.s32.totalorder %s72, %s75
      %p81 = scmp.eq.s32.totalorder %s15, 0
      %p82 = por %p80, %p81
      %p83 = scmp.ne.s32.totalorder %s72, %s75
      %p84 = scmp.eq.s32.totalorder %s20, 1
      %p85 = por %p83, %p84
      %p86 = scmp.ne.s32.totalorder %s75, %s76
      %p87 = scmp.eq.s32.totalorder %s20, 0
      %p88 = por %p86, %p87
      %p89 = scmp.ne.s32.totalorder %s75, %s76
      %p90 = scmp.eq.s32.totalorder %s21, 1
      %p91 = por %p89, %p90
      %p93 = scmp.ne.s32.totalorder %s76, %s92
      %p94 = scmp.eq.s32.totalorder %s21, 0
      %p95 = por %p93, %p94
      %s96 = ssub.s32 %s22, %s41
      %s97 = ssub.s32 %s23, %s37
      %s98 = sor.u32 %s96, %s97
      %s99 = ssub.s32 %s24, %s33
      %s100 = sor.u32 %s98, %s99
      %p101 = scmp.eq.s32.totalorder %s100, 0
      %s103 = sadd.s32 %s102, 1
      %s104 = scalar_select %p101, %s102, %s103
      %p107 = pneg %p101
      %p108 = scmp.eq.s32.totalorder %s15, 1
      %p109 = por %p107, %p108
      %p110 = scmp.ne.s32.totalorder %s102, %s105
      %p111 = scmp.eq.s32.totalorder %s15, 0
      %p112 = por %p110, %p111
      %p113 = scmp.ne.s32.totalorder %s102, %s105
      %p114 = scmp.eq.s32.totalorder %s20, 1
      %p115 = por %p113, %p114
      %p116 = scmp.ne.s32.totalorder %s105, %s106
      %p117 = scmp.eq.s32.totalorder %s20, 0
      %p118 = por %p116, %p117
      %p119 = scmp.ne.s32.totalorder %s105, %s106
      %p120 = scmp.eq.s32.totalorder %s21, 1
      %p121 = por %p119, %p120
      %p123 = scmp.ne.s32.totalorder %s106, %s122
      %p124 = scmp.eq.s32.totalorder %s21, 0
      %p125 = por %p123, %p124
      %p126 = scmp.le.s32.totalorder 1, %s15
      %p127 = scmp.lt.s32.totalorder %s15, 3
      %p128 = pnand %p126, %p127
      %p129 = pneg %p128
      // Predicated region
      $region9: #{tpu_custom_call.1} parent=5 // pred_check
        _
      $region10: #{tpu_custom_call.1} parent=5 // pred_check_branch
        %131 = sbr.rel (%p128) target = $region12
      $region11: #{tpu_custom_call.1} parent=5 // pred_region
        %s132 = ssub.s32 %s15, 1
        // Predicated region
        $region13: #{tpu_custom_call.1} parent=11 // pred_check
          %p133 = pneg %p88
        $region14: #{tpu_custom_call.1} parent=11 // pred_check_branch
          %135 = sbr.rel (%p133) target = $region16
        $region15: #{tpu_custom_call.1} parent=11 // pred_region
          %s137 = ssub.s32 384, 384
          %138 = vsyncadd [#allocation7], %s137
          %s139 = smul.addr %s26, 128
          %s140 = scalar_lea.hbm %s1, %s139
          %s141 = sshll.u32 [#allocation6], 4
          %s142 = int_to_ptr.vmem [resolvable:$true] %s141
          %147 = dma.hbm_to_vmem [thread:$0]  %s140, 384, %s142, [#allocation7], 128, 128, 8
        $region16: #{tpu_custom_call.1} parent=11 // pred_fallthru
          _
      $region12: #{tpu_custom_call.1} parent=5 // pred_fallthru
        _
      %p148 = scmp.lt.s32.totalorder %s15, 2
      // Predicated region
      $region17: #{tpu_custom_call.1} parent=5 // pred_check
        %p149 = pneg %p148
      $region18: #{tpu_custom_call.1} parent=5 // pred_check_branch
        %151 = sbr.rel (%p149) target = $region20
      $region19: #{tpu_custom_call.1} parent=5 // pred_region
        // Predicated region
        $region21: #{tpu_custom_call.1} parent=19 // pred_check
          %p152 = pneg %p56
        $region22: #{tpu_custom_call.1} parent=19 // pred_check_branch
          %154 = sbr.rel (%p152) target = $region24
        $region23: #{tpu_custom_call.1} parent=19 // pred_region
          %s155 = sand.u32 %s46, 1
          %s156 = scalar_lea.sflag [#allocation4], %s155
          %s157 = sand.u32 %s46, 1
          %s158 = smul.addr %s157, 8
          %s159 = scalar_lea.vmem [#allocation3], %s158
          %s161 = ssub.s32 128, 128
          %162 = vsyncadd %s156, %s161
          %s163 = sadd.s32 %s24, %s22
          %s164 = smul.addr %s163, 128
          %s165 = scalar_lea.hbm %s0, %s164
          %s167 = sshll.u32 %s159, 4
          %s168 = int_to_ptr.vmem [resolvable:$true] %s167
          %170 = dma.hbm_to_vmem [thread:$0]  %s165, 128, %s168, %s156
        $region24: #{tpu_custom_call.1} parent=19 // pred_fallthru
          _
      $region20: #{tpu_custom_call.1} parent=5 // pred_fallthru
        _
      %p171 = scmp.le.s32.totalorder 1, %s15
      %p172 = scmp.lt.s32.totalorder %s15, 3
      %p173 = pnand %p171, %p172
      %p174 = pneg %p173
      // Predicated region
      $region25: #{tpu_custom_call.1} parent=5 // pred_check
        _
      $region26: #{tpu_custom_call.1} parent=5 // pred_check_branch
        %176 = sbr.rel (%p173) target = $region28
      $region27: #{tpu_custom_call.1} parent=5 // pred_region
        %s177 = ssub.s32 %s15, 1
        %s178 = sand.u32 %s49, 1
        %s179 = scalar_lea.sflag [#allocation4], %s178
        %s180 = sand.u32 %s49, 1
        %s181 = smul.addr %s180, 8
        %s182 = scalar_lea.vmem [#allocation3], %s181
        // Predicated region
        $region29: #{tpu_custom_call.1} parent=27 // pred_check
          %p183 = pneg %p62
        $region30: #{tpu_custom_call.1} parent=27 // pred_check_branch
          %185 = sbr.rel (%p183) target = $region32
        $region31: #{tpu_custom_call.1} parent=27 // pred_region
          %186 = dma.done %s179, 128
        $region32: #{tpu_custom_call.1} parent=27 // pred_fallthru
          _
        // Predicated region
        $region33: #{tpu_custom_call.1} parent=27 // pred_check
          %p187 = pneg %p88
        $region34: #{tpu_custom_call.1} parent=27 // pred_check_branch
          %189 = sbr.rel (%p187) target = $region36
        $region35: #{tpu_custom_call.1} parent=27 // pred_region
          %190 = dma.done [#allocation7], 384
        $region36: #{tpu_custom_call.1} parent=27 // pred_fallthru
          _
        %s191 = sand.u32 %s49, 1
        %s192 = scalar_lea.sflag [#allocation4], %s191
        %s193 = sand.u32 %s49, 1
        %s194 = smul.addr %s193, 8
        %s195 = scalar_lea.vmem [#allocation3], %s194
        %p196 = pneg %p62
        %p197 = pneg %p59
        %p198 = pneg %p88
        %p199 = pneg %p85
        %p200 = pneg %p118
        %p201 = pneg %p115
        %s202 = sand.u32 %s105, 1
        %s203 = scalar_lea.sflag [#allocation5], %s202
        %s204 = sand.u32 %s105, 1
        %s205 = smul.addr %s204, 8
        %s206 = scalar_lea.vmem [#allocation8], %s205
        %p207 = scmp.eq.s32.totalorder %s27, 0
        // Predicated region
        $region37: #{tpu_custom_call.1} parent=27 // pred_check
          %p208 = pneg %p207
        $region38: #{tpu_custom_call.1} parent=27 // pred_check_branch
          %210 = sbr.rel (%p208) target = $region40
        $region39: #{tpu_custom_call.1} parent=27 // pred_region
          %vm211 = vcmask 31744
          %212 = vst.msk [vmem:[#allocation2] sm:$0xff] %vm211, 0.0
        $region40: #{tpu_custom_call.1} parent=27 // pred_fallthru
          _
        %v213 = vld [vmem:[#allocation2] sm:$0xff]
        %v214 = vld [vmem:[%s182] sm:$0xff]
        %216 = vrot.lane.b32.xlu0 %v214, 4
        %v217 = vpop.permute.xlu0 %216
        %vm219 = vcmask 31744
        %v220 = vsel %vm219, %v213, %v217
        %v221 = vld [vmem:[#allocation6] sm:$0xff]
        %s222 = scalar_lea.vmem [#allocation6], 8
        %v223 = vld [vmem:[%s222] sm:$0xff]
        %225 = vrot.lane.b32.xlu0 %v220, 126
        %v226 = vpop.permute.xlu0 %225
        %vm228 = vcmask 64512
        %v230 = vsel %vm228, %v223, 0
        %232 = vmatprep.subr.mxu0 0.0
        %233 = vmatpush1.msra.mxu0 0.0
        %234 = vmatprep.subr.mxu0 0.0
        %235 = vmatpush1.msra.mxu0 0.0
        %236 = vmatprep.subr.mxu0 0.0
        %237 = vmatpush1.msra.mxu0 0.0
        %238 = vmatprep.subr.mxu0 0.0
        %239 = vmatpush1.msra.mxu0 0.0
        %240 = vmatprep.subr.mxu0 0.0
        %241 = vmatpush1.msra.mxu0 0.0
        %242 = vmatprep.subr.mxu0 0.0
        %243 = vmatpush1.msra.mxu0 0.0
        %244 = vmatprep.subr.mxu0 0.0
        %245 = vmatpush1.msra.mxu0 0.0
        %246 = vmatprep.subr.mxu0 0.0
        %247 = vmatpush1.msra.mxu0 0.0
        %248 = vmatprep.subr.mxu0 0.0
        %249 = vmatpush1.msra.mxu0 0.0
        %250 = vmatprep.subr.mxu0 0.0
        %251 = vmatpush1.msra.mxu0 0.0
        %252 = vmatprep.subr.mxu0 0.0
        %253 = vmatpush1.msra.mxu0 0.0
        %254 = vmatprep.subr.mxu0 0.0
        %255 = vmatpush1.msra.mxu0 0.0
        %256 = vmatprep.subr.mxu0 0.0
        %257 = vmatpush1.msra.mxu0 0.0
        %258 = vmatprep.subr.mxu0 0.0
        %259 = vmatpush1.msra.mxu0 0.0
        %260 = vmatprep.subr.mxu0 0.0
        %261 = vmatpush1.msra.mxu0 0.0
        %262 = vmatprep.subr.mxu0 0.0
        %263 = vmatpush1.msra.mxu0 %v226
        %264 = vmatprep.subr.mxu0 0.0
        %265 = vmatpush2.msra.mxu0 0.0
        %266 = vmatprep.subr.mxu0 0.0
        %267 = vmatpush2.msra.mxu0 0.0
        %268 = vmatprep.subr.mxu0 0.0
        %269 = vmatpush2.msra.mxu0 0.0
        %270 = vmatprep.subr.mxu0 0.0
        %271 = vmatpush2.msra.mxu0 0.0
        %272 = vmatprep.subr.mxu0 0.0
        %273 = vmatpush2.msra.mxu0 0.0
        %274 = vmatprep.subr.mxu0 0.0
        %275 = vmatpush2.msra.mxu0 0.0
        %276 = vmatprep.subr.mxu0 0.0
        %277 = vmatpush2.msra.mxu0 0.0
        %278 = vmatprep.subr.mxu0 0.0
        %279 = vmatpush2.msra.mxu0 0.0
        %280 = vmatprep.subr.mxu0 0.0
        %281 = vmatpush2.msra.mxu0 0.0
        %282 = vmatprep.subr.mxu0 0.0
        %283 = vmatpush2.msra.mxu0 0.0
        %284 = vmatprep.subr.mxu0 0.0
        %285 = vmatpush2.msra.mxu0 0.0
        %286 = vmatprep.subr.mxu0 0.0
        %287 = vmatpush2.msra.mxu0 0.0
        %288 = vmatprep.subr.mxu0 0.0
        %289 = vmatpush2.msra.mxu0 0.0
        %290 = vmatprep.subr.mxu0 0.0
        %291 = vmatpush2.msra.mxu0 0.0
        %292 = vmatprep.subr.mxu0 0.0
        %293 = vmatpush2.msra.mxu0 0.0
        %294 = vmatprep.subr.mxu0 0.0
        %295 = vmatpush2.msra.mxu0 0.0
        %296 = vmatprep.mubr.f32.mxu0 0.0
        %297 = vmatmul.mubr.f32.gmra.mxu0 %v230
        %v298 = vpop.f32.mrf.mxu0
        %v299 = vadd.f32 0.0, %v298
        %v300 = vpop.f32.mrf.mxu0
        %301 = vdwg.mxu0
        %v303 = vsel %vm228, %v221, 0
        %305 = vmatprep.subr.mxu0 0.0
        %306 = vmatpush1.msra.mxu0 0.0
        %307 = vmatprep.subr.mxu0 0.0
        %308 = vmatpush1.msra.mxu0 0.0
        %309 = vmatprep.subr.mxu0 0.0
        %310 = vmatpush1.msra.mxu0 0.0
        %311 = vmatprep.subr.mxu0 0.0
        %312 = vmatpush1.msra.mxu0 0.0
        %313 = vmatprep.subr.mxu0 0.0
        %314 = vmatpush1.msra.mxu0 0.0
        %315 = vmatprep.subr.mxu0 0.0
        %316 = vmatpush1.msra.mxu0 0.0
        %317 = vmatprep.subr.mxu0 0.0
        %318 = vmatpush1.msra.mxu0 0.0
        %319 = vmatprep.subr.mxu0 0.0
        %320 = vmatpush1.msra.mxu0 0.0
        %321 = vmatprep.subr.mxu0 0.0
        %322 = vmatpush1.msra.mxu0 0.0
        %323 = vmatprep.subr.mxu0 0.0
        %324 = vmatpush1.msra.mxu0 0.0
        %325 = vmatprep.subr.mxu0 0.0
        %326 = vmatpush1.msra.mxu0 0.0
        %327 = vmatprep.subr.mxu0 0.0
        %328 = vmatpush1.msra.mxu0 0.0
        %329 = vmatprep.subr.mxu0 0.0
        %330 = vmatpush1.msra.mxu0 0.0
        %331 = vmatprep.subr.mxu0 0.0
        %332 = vmatpush1.msra.mxu0 0.0
        %333 = vmatprep.subr.mxu0 0.0
        %334 = vmatpush1.msra.mxu0 0.0
        %335 = vmatprep.subr.mxu0 0.0
        %336 = vmatpush1.msra.mxu0 %v220
        %337 = vmatprep.subr.mxu0 0.0
        %338 = vmatpush2.msra.mxu0 0.0
        %339 = vmatprep.subr.mxu0 0.0
        %340 = vmatpush2.msra.mxu0 0.0
        %341 = vmatprep.subr.mxu0 0.0
        %342 = vmatpush2.msra.mxu0 0.0
        %343 = vmatprep.subr.mxu0 0.0
        %344 = vmatpush2.msra.mxu0 0.0
        %345 = vmatprep.subr.mxu0 0.0
        %346 = vmatpush2.msra.mxu0 0.0
        %347 = vmatprep.subr.mxu0 0.0
        %348 = vmatpush2.msra.mxu0 0.0
        %349 = vmatprep.subr.mxu0 0.0
        %350 = vmatpush2.msra.mxu0 0.0
        %351 = vmatprep.subr.mxu0 0.0
        %352 = vmatpush2.msra.mxu0 0.0
        %353 = vmatprep.subr.mxu0 0.0
        %354 = vmatpush2.msra.mxu0 0.0
        %355 = vmatprep.subr.mxu0 0.0
        %356 = vmatpush2.msra.mxu0 0.0
        %357 = vmatprep.subr.mxu0 0.0
        %358 = vmatpush2.msra.mxu0 0.0
        %359 = vmatprep.subr.mxu0 0.0
        %360 = vmatpush2.msra.mxu0 0.0
        %361 = vmatprep.subr.mxu0 0.0
        %362 = vmatpush2.msra.mxu0 0.0
        %363 = vmatprep.subr.mxu0 0.0
        %364 = vmatpush2.msra.mxu0 0.0
        %365 = vmatprep.subr.mxu0 0.0
        %366 = vmatpush2.msra.mxu0 0.0
        %367 = vmatprep.subr.mxu0 0.0
        %368 = vmatpush2.msra.mxu0 0.0
        %369 = vmatprep.mubr.f32.mxu0 0.0
        %370 = vmatmul.mubr.f32.gmra.mxu0 %v303
        %v371 = vpop.f32.mrf.mxu0
        %v372 = vadd.f32 %v299, %v371
        %v373 = vpop.f32.mrf.mxu0
        %374 = vdwg.mxu0
        %s375 = scalar_lea.vmem [#allocation6], 16
        %v376 = vld [vmem:[%s375] sm:$0xff]
        %377 = vrot.lane.b32.xlu0 %v220, 124
        %v378 = vpop.permute.xlu0 %377
        %v381 = vsel %vm228, %v376, 0
        %383 = vmatprep.subr.mxu0 0.0
        %384 = vmatpush1.msra.mxu0 0.0
        %385 = vmatprep.subr.mxu0 0.0
        %386 = vmatpush1.msra.mxu0 0.0
        %387 = vmatprep.subr.mxu0 0.0
        %388 = vmatpush1.msra.mxu0 0.0
        %389 = vmatprep.subr.mxu0 0.0
        %390 = vmatpush1.msra.mxu0 0.0
        %391 = vmatprep.subr.mxu0 0.0
        %392 = vmatpush1.msra.mxu0 0.0
        %393 = vmatprep.subr.mxu0 0.0
        %394 = vmatpush1.msra.mxu0 0.0
        %395 = vmatprep.subr.mxu0 0.0
        %396 = vmatpush1.msra.mxu0 0.0
        %397 = vmatprep.subr.mxu0 0.0
        %398 = vmatpush1.msra.mxu0 0.0
        %399 = vmatprep.subr.mxu0 0.0
        %400 = vmatpush1.msra.mxu0 0.0
        %401 = vmatprep.subr.mxu0 0.0
        %402 = vmatpush1.msra.mxu0 0.0
        %403 = vmatprep.subr.mxu0 0.0
        %404 = vmatpush1.msra.mxu0 0.0
        %405 = vmatprep.subr.mxu0 0.0
        %406 = vmatpush1.msra.mxu0 0.0
        %407 = vmatprep.subr.mxu0 0.0
        %408 = vmatpush1.msra.mxu0 0.0
        %409 = vmatprep.subr.mxu0 0.0
        %410 = vmatpush1.msra.mxu0 0.0
        %411 = vmatprep.subr.mxu0 0.0
        %412 = vmatpush1.msra.mxu0 0.0
        %413 = vmatprep.subr.mxu0 0.0
        %414 = vmatpush1.msra.mxu0 %v378
        %415 = vmatprep.subr.mxu0 0.0
        %416 = vmatpush2.msra.mxu0 0.0
        %417 = vmatprep.subr.mxu0 0.0
        %418 = vmatpush2.msra.mxu0 0.0
        %419 = vmatprep.subr.mxu0 0.0
        %420 = vmatpush2.msra.mxu0 0.0
        %421 = vmatprep.subr.mxu0 0.0
        %422 = vmatpush2.msra.mxu0 0.0
        %423 = vmatprep.subr.mxu0 0.0
        %424 = vmatpush2.msra.mxu0 0.0
        %425 = vmatprep.subr.mxu0 0.0
        %426 = vmatpush2.msra.mxu0 0.0
        %427 = vmatprep.subr.mxu0 0.0
        %428 = vmatpush2.msra.mxu0 0.0
        %429 = vmatprep.subr.mxu0 0.0
        %430 = vmatpush2.msra.mxu0 0.0
        %431 = vmatprep.subr.mxu0 0.0
        %432 = vmatpush2.msra.mxu0 0.0
        %433 = vmatprep.subr.mxu0 0.0
        %434 = vmatpush2.msra.mxu0 0.0
        %435 = vmatprep.subr.mxu0 0.0
        %436 = vmatpush2.msra.mxu0 0.0
        %437 = vmatprep.subr.mxu0 0.0
        %438 = vmatpush2.msra.mxu0 0.0
        %439 = vmatprep.subr.mxu0 0.0
        %440 = vmatpush2.msra.mxu0 0.0
        %441 = vmatprep.subr.mxu0 0.0
        %442 = vmatpush2.msra.mxu0 0.0
        %443 = vmatprep.subr.mxu0 0.0
        %444 = vmatpush2.msra.mxu0 0.0
        %445 = vmatprep.subr.mxu0 0.0
        %446 = vmatpush2.msra.mxu0 0.0
        %447 = vmatprep.mubr.f32.mxu0 0.0
        %448 = vmatmul.mubr.f32.gmra.mxu0 %v381
        %v449 = vpop.f32.mrf.mxu0
        %v450 = vadd.f32 0.0, %v449
        %v451 = vpop.f32.mrf.mxu0
        %452 = vdwg.mxu0
        %v453 = vadd.f32 %v372, %v450
        %vm454 = vcmask 130048
        %455 = vst.msk [vmem:[%s206] sm:$0xff] %vm454, %v453
        %s456 = sand.u32 %s105, 1
        %s457 = scalar_lea.sflag [#allocation5], %s456
        %s458 = sand.u32 %s105, 1
        %s459 = smul.addr %s458, 8
        %s460 = scalar_lea.vmem [#allocation8], %s459
        // Predicated region
        $region41: #{tpu_custom_call.1} parent=27 // pred_check
          %p461 = pneg %p115
        $region42: #{tpu_custom_call.1} parent=27 // pred_check_branch
          %463 = sbr.rel (%p461) target = $region44
        $region43: #{tpu_custom_call.1} parent=27 // pred_region
          %s465 = ssub.s32 128, 128
          %466 = vsyncadd %s457, %s465
          %s467 = sadd.s32 %s27, %s26
          %s468 = sadd.s32 %s467, %s25
          %s469 = smul.addr %s468, 128
          %s470 = scalar_lea.hbm %s2, %s469
          %s472 = sshll.u32 %s460, 4
          %s473 = int_to_ptr.vmem [resolvable:$true] %s472
          %475 = dma.vmem_to_hbm [thread:$0]  %s473, 128, %s470, %s457
        $region44: #{tpu_custom_call.1} parent=27 // pred_fallthru
          _
      $region28: #{tpu_custom_call.1} parent=5 // pred_fallthru
        _
      %p476 = scmp.le.s32.totalorder 2, %s15
      // Predicated region
      $region45: #{tpu_custom_call.1} parent=5 // pred_check
        %p477 = pneg %p476
      $region46: #{tpu_custom_call.1} parent=5 // pred_check_branch
        %479 = sbr.rel (%p477) target = $region48
      $region47: #{tpu_custom_call.1} parent=5 // pred_region
        %s480 = ssub.s32 %s15, 2
        // Predicated region
        $region49: #{tpu_custom_call.1} parent=47 // pred_check
          %p481 = pneg %p121
        $region50: #{tpu_custom_call.1} parent=47 // pred_check_branch
          %483 = sbr.rel (%p481) target = $region52
        $region51: #{tpu_custom_call.1} parent=47 // pred_region
          %s484 = sand.u32 %s106, 1
          %s485 = scalar_lea.sflag [#allocation5], %s484
          %s486 = sand.u32 %s106, 1
          %s487 = smul.addr %s486, 8
          %s488 = scalar_lea.vmem [#allocation8], %s487
          %489 = dma.done %s485, 128
        $region52: #{tpu_custom_call.1} parent=47 // pred_fallthru
          _
      $region48: #{tpu_custom_call.1} parent=5 // pred_fallthru
        _
    $region6: #{tpu_custom_call.1} parent=1 // loop_footer
      %s19 = sadd.s32 1, %s15
    $region7: #{tpu_custom_call.1} parent=1 // loop_footer_branch
      %14 = sbr.rel target = $region3
    $region8: #{tpu_custom_call.1} parent=1 // loop_exit
      _
    %490 = vsyncpa [#allocation4], 1
    %s491 = scalar_lea.sflag [#allocation4], 1
    %492 = vsyncpa %s491, 1
    %493 = vsyncpa [#allocation7], 1
    %494 = vsyncpa [#allocation5], 1
    %s495 = scalar_lea.sflag [#allocation5], 1
    %496 = vsyncpa %s495, 1

</llo_original>
